<compile_context>
chip_gen: v7x
topology: tpu7x:2x2x1
jax: 0.10.0
libtpu: 0.0.40
codegen_flags: <defaults>
</compile_context>

<pallas_src>
import functools
from typing import NamedTuple

import jax
import jax.numpy as jnp
from jax import lax
from jax.experimental import pallas as pl
from jax.experimental.pallas import tpu as pltpu


_INV_SQRT2 = 0.7071067811865476


# ---------------------------------------------------------------------------
# Kernel
# ---------------------------------------------------------------------------
def _geglu_kernel(x_ref, w_ref, b_ref, o_ref, acc_ref, *, tn):
    """Grid = (M tiles, N tiles, K tiles); K (reduction) is the last axis."""
    k = pl.program_id(2)

    @pl.when(k == 0)
    def _():
        # Fold the bias into the accumulator init (no epilogue adds).
        acc_ref[...] = jnp.broadcast_to(
            b_ref[...].astype(jnp.float32), acc_ref.shape)

    # One fused MXU stream over the packed [Wv_tile | Wg_tile] weights
    # (bf16 x bf16 -> f32 accumulate).
    acc_ref[...] += jnp.dot(x_ref[...], w_ref[...],
                            preferred_element_type=jnp.float32)

    @pl.when(k == pl.num_programs(2) - 1)
    def _():
        # Lane-aligned ref slices: tn is a multiple of 128, so the v/g split
        # needs no cross-lane shuffles and stores stay unmasked.
        v = acc_ref[:, :tn]
        g = acc_ref[:, tn:]
        # Exact (erf-based) GELU — matches torch.nn.functional.gelu default.
        gelu_g = 0.5 * g * (1.0 + lax.erf(g * _INV_SQRT2))
        o_ref[...] = (v * gelu_g).astype(o_ref.dtype)


# ---------------------------------------------------------------------------
# Tiling / VMEM planning
# ---------------------------------------------------------------------------
def _round_up(x, m):
    return (x + m - 1) // m * m


def _pick_divisor(dim, preferred, align):
    """Largest multiple of `align` <= preferred that divides `dim` (so the hot
    path needs no padded copy); otherwise the candidate with least padding."""
    floor = max(align, preferred // 2)
    for cand in range(preferred, floor - 1, -align):
        if dim % cand == 0:
            return cand
    best, best_pad = preferred, _round_up(dim, preferred) - dim
    cand = preferred // 2
    while cand >= align:
        pad = _round_up(dim, cand) - dim
        if pad < best_pad:
            best, best_pad = cand, pad
        cand //= 2
    return best


def geglu_tile_plan(M, dim_in, dim_out, *,
                    tm_pref=512, tn_pref=1024, tk_pref=1024):
    """Returns (tm, tn, tk).

    tn is always a multiple of 128 (weights/bias padded along N at init, off
    the hot path).  tm/tk prefer full extent or an exact divisor so x needs no
    padded copy per forward call.
    """
    tm = M if M <= tm_pref else _pick_divisor(M, tm_pref, 16)
    if dim_out <= tn_pref:
        tn = _round_up(dim_out, 128)
    else:
        tn = _pick_divisor(_round_up(dim_out, 128), tn_pref, 128)
    tk = dim_in if dim_in <= tk_pref else _pick_divisor(dim_in, tk_pref, 128)

    # v7x has 2 TensorCores sharded over the 'parallel' grid axes: make sure
    # there are >= 2 parallel tiles when alignment allows (harmless on 1-TC).
    mp = _round_up(M, tm)
    np_ = _round_up(dim_out, tn)
    if (mp // tm) * (np_ // tn) < 2:
        if tn % 256 == 0:
            tn //= 2
        elif tm % 32 == 0 and M % (tm // 2) == 0:
            tm //= 2
    return tm, tn, tk


def _vmem_budget_bytes():
    """Generation-aware VMEM budget with headroom below the physical cap."""
    try:
        cap = int(pltpu.get_tpu_info().vmem_capacity_bytes)
    except Exception:  # API unavailable: conservative (v7x-sized) default
        cap = 64 * 1024 * 1024
    if cap <= 64 * 1024 * 1024:           # v7x: 64 MiB per TensorCore
        return (3 * cap) // 4             # ~48 MiB, leave compiler headroom
    # v5e/v6e: 128 MiB physical; don't throw half of it away.
    return min(cap - 28 * 1024 * 1024, 100 * 1024 * 1024)


def _weight_block_spec(tk, tn, n_buffers):
    index_map = lambda i, j, k: (k, j)
    if n_buffers > 2:
        try:
            return pl.BlockSpec((tk, 2 * tn), index_map,
                                pipeline_mode=pl.Buffered(n_buffers))
        except (AttributeError, TypeError):
            pass  # older Pallas without pipeline_mode: plain double-buffering
    return pl.BlockSpec((tk, 2 * tn), index_map)


# ---------------------------------------------------------------------------
# One-time weight packing (init time, off the hot path)
# ---------------------------------------------------------------------------
class GegluParams(NamedTuple):
    w_packed: jax.Array   # (Kp, n_tiles * 2 * tn), [Wv_j | Wg_j] per tile j
    b_packed: jax.Array   # (1,  n_tiles * 2 * tn), f32
    dim_out: int
    tn: int
    tk: int


def prepare_geglu_params(w, b, *, tn, tk, compute_dtype=jnp.bfloat16):
    """Pack nn.Linear weights once.  w: (2*dim_out, dim_in), b: (2*dim_out,).

    Weights are cast to `compute_dtype` (bf16 by default) so the MXU runs at
    its native rate and weight DMA bytes are halved; the bias stays f32 and is
    folded into the f32 accumulator inside the kernel.
    """
    two_dout, dim_in = w.shape
    dim_out = two_dout // 2
    assert tn % 128 == 0, "tn must be lane-aligned (multiple of 128)"

    w_v = jnp.transpose(w[:dim_out, :]).astype(compute_dtype)   # (K, N)
    w_g = jnp.transpose(w[dim_out:, :]).astype(compute_dtype)   # (K, N)
    b_v = b[:dim_out].astype(jnp.float32)
    b_g = b[dim_out:].astype(jnp.float32)

    kp = dim_in if dim_in % tk == 0 else _round_up(dim_in, tk)
    np_ = _round_up(dim_out, tn)
    if kp != dim_in or np_ != dim_out:
        # Zero K/N padding is exact (zero weight rows contribute nothing;
        # padded output columns are sliced off).
        w_v = jnp.pad(w_v, ((0, kp - dim_in), (0, np_ - dim_out)))
        w_g = jnp.pad(w_g, ((0, kp - dim_in), (0, np_ - dim_out)))
        b_v = jnp.pad(b_v, (0, np_ - dim_out))
        b_g = jnp.pad(b_g, (0, np_ - dim_out))

    nt = np_ // tn
    w_packed = jnp.concatenate(
        [w_v.reshape(kp, nt, tn), w_g.reshape(kp, nt, tn)], axis=-1
    ).reshape(kp, nt * 2 * tn)
    b_packed = jnp.concatenate(
        [b_v.reshape(nt, tn), b_g.reshape(nt, tn)], axis=-1
    ).reshape(1, nt * 2 * tn)
    return GegluParams(w_packed, b_packed, dim_out, tn, tk)


# ---------------------------------------------------------------------------
# Forward
# ---------------------------------------------------------------------------
@functools.partial(jax.jit, static_argnames=("dim_out", "tm", "tn", "tk"))
def _geglu_pallas_impl(x, w_packed, b_packed, *, dim_out, tm, tn, tk):
    out_dtype = x.dtype
    B, S, dim_in = x.shape
    M = B * S

    kp, np2 = w_packed.shape
    assert np2 % (2 * tn) == 0 and b_packed.shape == (1, np2), \
        "packed params inconsistent with tn"
    assert kp >= dim_in and kp % tk == 0, "weights were packed with a different tk"
    np_ = np2 // 2
    assert dim_out <= np_ < dim_out + tn, "packed params inconsistent with dim_out/tn"

    x2d = x.reshape(M, dim_in)
    # Feed the MXU the packed (bf16) dtype; accumulation stays f32 in-kernel.
    if x2d.dtype != w_packed.dtype:
        x2d = x2d.astype(w_packed.dtype)

    mp = _round_up(M, tm)
    if mp != M or kp != dim_in:
        # Only taken when the tile plan could not avoid it; zero K-padding is
        # exact for the reduction, padded rows are sliced off below.
        x2d = jnp.pad(x2d, ((0, mp - M), (0, kp - dim_in)))

    grid = (mp // tm, np_ // tn, kp // tk)
    n_steps = grid[0] * grid[1] * grid[2]

    in_sz = x2d.dtype.itemsize
    w_sz = w_packed.dtype.itemsize
    b_sz = b_packed.dtype.itemsize
    out_sz = out_dtype.itemsize

    def footprint(wbuf):
        return (2 * tm * tk * in_sz                 # x (double-buffered)
                + wbuf * tk * 2 * tn * w_sz         # packed weights
                + 2 * 2 * tn * b_sz                 # packed bias
                + 2 * tm * tn * out_sz              # output
                + tm * 2 * tn * 4)                  # f32 accumulator

    budget = _vmem_budget_bytes()
    # Deeper weight pipeline only when there is a real pipeline to deepen and
    # VMEM headroom for it (helps most on v5e where HBM BW is tightest).
    w_buffers = 3 if (grid[2] >= 2 and n_steps >= 4
                      and footprint(3) <= (3 * budget) // 5) else 2
    vmem_limit = int(min(budget, max(2 * footprint(w_buffers), 32 * 1024 * 1024)))

    cost = pl.CostEstimate(
        flops=2 * mp * kp * (2 * np_),
        transcendentals=mp * np_,
        bytes_accessed=(mp * kp * in_sz + kp * 2 * np_ * w_sz
                        + 2 * np_ * b_sz + mp * np_ * out_sz),
    )

    out2d = pl.pallas_call(
        functools.partial(_geglu_kernel, tn=tn),
        out_shape=jax.ShapeDtypeStruct((mp, np_), out_dtype),
        grid_spec=pltpu.PrefetchScalarGridSpec(
            num_scalar_prefetch=0,
            grid=grid,
            in_specs=[
                pl.BlockSpec((tm, tk), lambda i, j, k: (i, k)),     # x
                _weight_block_spec(tk, tn, w_buffers),              # [Wv|Wg]
                pl.BlockSpec((1, 2 * tn), lambda i, j, k: (0, j)),  # [bv|bg]
            ],
            out_specs=pl.BlockSpec((tm, tn), lambda i, j, k: (i, j)),
            scratch_shapes=[pltpu.VMEM((tm, 2 * tn), jnp.float32)],
        ),
        compiler_params=pltpu.CompilerParams(
            dimension_semantics=("parallel", "parallel", "arbitrary"),
            vmem_limit_bytes=vmem_limit),
        cost_estimate=cost,
    )(x2d, w_packed, b_packed)

    if mp != M or np_ != dim_out:
        out2d = out2d[:M, :dim_out]
    return out2d.reshape(B, S, dim_out)


def geglu_pallas(x, params: GegluParams, *, tm=None):
    """x: (B, S, dim_in) -> (B, S, dim_out).  tn/tk/dim_out come from the
    packed params, so the kernel's v/g split can never be mismatched."""
    B, S, _ = x.shape
    M = B * S
    np_ = params.w_packed.shape[1] // 2
    if tm is None:
        tm = M if M <= 512 else _pick_divisor(M, 512, 16)
        if ((_round_up(M, tm) // tm) * (np_ // params.tn) < 2
                and tm % 32 == 0 and M % (tm // 2) == 0):
            tm //= 2
    return _geglu_pallas_impl(x, params.w_packed, params.b_packed,
                              dim_out=params.dim_out, tm=int(tm),
                              tn=params.tn, tk=params.tk)


# ---------------------------------------------------------------------------
# Reference & test
# ---------------------------------------------------------------------------
def geglu_reference(x, w, b):
    """Pure-JAX reference matching the PyTorch module (full f32)."""
    y = jnp.einsum("bsi,oi->bso", x, w, precision=lax.Precision.HIGHEST) + b
    dim_out = w.shape[0] // 2
    v, g = y[..., :dim_out], y[..., dim_out:]
    return v * (0.5 * g * (1.0 + lax.erf(g * _INV_SQRT2)))


if __name__ == "__main__":
    batch, seq, dim_in, dim_out = 2, 8, 32, 32

    key = jax.random.PRNGKey(0)
    kx, kw, kb = jax.random.split(key, 3)

    x = jax.random.normal(kx, (batch, seq, dim_in), dtype=jnp.float32)
    # Deterministic init mimicking nn.Linear (uniform in +/- 1/sqrt(dim_in)).
    bound = 1.0 / jnp.sqrt(float(dim_in))
    w = jax.random.uniform(kw, (2 * dim_out, dim_in), jnp.float32, -bound, bound)
    b = jax.random.uniform(kb, (2 * dim_out,), jnp.float32, -bound, bound)

    # Tile plan + one-time weight packing (hoisted off the forward hot path).
    tm, tn, tk = geglu_tile_plan(batch * seq, dim_in, dim_out)
    params = prepare_geglu_params(w, b, tn=tn, tk=tk)  # bf16 MXU weights

    out = geglu_pallas(x, params, tm=tm)
    jax.block_until_ready(out)
    assert out.shape == (batch, seq, dim_out)

    # Tight check against a bf16-consistent reference (same operand rounding
    # the kernel sees, f32 math) — verifies the kernel logic itself.
    x_b = x.astype(jnp.bfloat16).astype(jnp.float32)
    w_b = w.astype(jnp.bfloat16).astype(jnp.float32)
    ref_b = geglu_reference(x_b, w_b, b)
    assert jnp.allclose(out, ref_b, atol=2e-3, rtol=2e-3)

    # Loose check against the exact-f32 reference (bf16 MXU rounding only).
    ref = geglu_reference(x, w, b)
    assert jnp.allclose(out, ref, atol=5e-2, rtol=5e-2)

    print("KERNEL_OK")
</pallas_src>

<mosaic_0001>
module attributes {stable_mosaic.version = 11 : i64} {
  func.func @_geglu_kernel(%arg0: i32, %arg1: i32, %arg2: i32, %arg3: memref<16x32xbf16, #tpu.memory_space<vmem>>, %arg4: memref<32x256xbf16, #tpu.memory_space<vmem>>, %arg5: memref<1x256xf32, #tpu.memory_space<vmem>>, %arg6: memref<16x128xf32, #tpu.memory_space<vmem>>, %arg7: memref<16x256xf32, #tpu.memory_space<vmem>>) attributes {dimension_semantics = [#tpu.dimension_semantics<parallel>, #tpu.dimension_semantics<parallel>, #tpu.dimension_semantics<arbitrary>], iteration_bounds = array<i64: 1, 1, 1>, scalar_prefetch = 0 : i64, scratch_operands = 1 : i64, tpu.core_type = #tpu.core_type<tc>, window_params = [{transform_indices = @transform_0, window_bounds = array<i64: 16, 32>}, {transform_indices = @transform_1, window_bounds = array<i64: 32, 256>}, {transform_indices = @transform_2, window_bounds = array<i64: 1, 256>}, {transform_indices = @transform_3, window_bounds = array<i64: 16, 128>}]} {
    %c0_i32 = arith.constant 0 : i32
    %0 = arith.cmpi eq, %arg2, %c0_i32 : i32
    %1 = arith.extui %0 : i1 to i32
    %c0_i32_0 = arith.constant 0 : i32
    %2 = arith.cmpi ne, %1, %c0_i32_0 : i32
    scf.if %2 {
      %c0_10 = arith.constant 0 : index
      %c0_11 = arith.constant 0 : index
      %12 = vector.load %arg5[%c0_10, %c0_11] : memref<1x256xf32, #tpu.memory_space<vmem>>, vector<1x256xf32>
      %13 = vector.shape_cast %12 : vector<1x256xf32> to vector<1x256xf32>
      %14 = vector.broadcast %13 : vector<1x256xf32> to vector<16x256xf32>
      %c0_12 = arith.constant 0 : index
      %c0_13 = arith.constant 0 : index
      %15 = vector.load %arg7[%c0_12, %c0_13] : memref<16x256xf32, #tpu.memory_space<vmem>>, vector<16x256xf32>
      tpu.vector_store %arg7[%c0_12, %c0_13], %14 {strides = array<i32>} : memref<16x256xf32, #tpu.memory_space<vmem>>, vector<16x256xf32>,
    } else {
    }
    %c0 = arith.constant 0 : index
    %c0_1 = arith.constant 0 : index
    %3 = vector.load %arg7[%c0, %c0_1] : memref<16x256xf32, #tpu.memory_space<vmem>>, vector<16x256xf32>
    %c0_2 = arith.constant 0 : index
    %c0_3 = arith.constant 0 : index
    %4 = vector.load %arg3[%c0_2, %c0_3] : memref<16x32xbf16, #tpu.memory_space<vmem>>, vector<16x32xbf16>
    %c0_4 = arith.constant 0 : index
    %c0_5 = arith.constant 0 : index
    %5 = vector.load %arg4[%c0_4, %c0_5] : memref<32x256xbf16, #tpu.memory_space<vmem>>, vector<32x256xbf16>
    %cst = arith.constant dense<0.000000e+00> : vector<16x256xf32>
    %6 = tpu.matmul %4, %5, %cst {dimension_numbers = #tpu.dot_dimension_numbers<[1], [0], [0], [1], [0, 0, 1, 1], [], []>} : vector<16x32xbf16>, vector<32x256xbf16>, vector<16x256xf32> -> vector<16x256xf32>
    %7 = arith.addf %3, %6 : vector<16x256xf32>
    %c0_6 = arith.constant 0 : index
    %c0_7 = arith.constant 0 : index
    %8 = vector.load %arg7[%c0_6, %c0_7] : memref<16x256xf32, #tpu.memory_space<vmem>>, vector<16x256xf32>
    tpu.vector_store %arg7[%c0_6, %c0_7], %7 {strides = array<i32>} : memref<16x256xf32, #tpu.memory_space<vmem>>, vector<16x256xf32>,
    %c0_i32_8 = arith.constant 0 : i32
    %9 = arith.cmpi eq, %arg2, %c0_i32_8 : i32
    %10 = arith.extui %9 : i1 to i32
    %c0_i32_9 = arith.constant 0 : i32
    %11 = arith.cmpi ne, %10, %c0_i32_9 : i32
    scf.if %11 {
      %c0_10 = arith.constant 0 : index
      %c0_11 = arith.constant 0 : index
      %12 = vector.load %arg7[%c0_10, %c0_11] : memref<16x256xf32, #tpu.memory_space<vmem>>, vector<16x128xf32>
      %c0_12 = arith.constant 0 : index
      %c128 = arith.constant 128 : index
      %13 = vector.load %arg7[%c0_12, %c128] : memref<16x256xf32, #tpu.memory_space<vmem>>, vector<16x128xf32>
      %cst_13 = arith.constant 5.000000e-01 : f32
      %14 = vector.broadcast %cst_13 : f32 to vector<16x128xf32>
      %15 = arith.mulf %14, %13 : vector<16x128xf32>
      %cst_14 = arith.constant 0.707106769 : f32
      %16 = vector.broadcast %cst_14 : f32 to vector<16x128xf32>
      %17 = arith.mulf %13, %16 : vector<16x128xf32>
      %18 = math.erf %17 : vector<16x128xf32>
      %cst_15 = arith.constant 1.000000e+00 : f32
      %19 = vector.broadcast %cst_15 : f32 to vector<16x128xf32>
      %20 = arith.addf %19, %18 : vector<16x128xf32>
      %21 = arith.mulf %15, %20 : vector<16x128xf32>
      %22 = arith.mulf %12, %21 : vector<16x128xf32>
      %c0_16 = arith.constant 0 : index
      %c0_17 = arith.constant 0 : index
      %23 = vector.load %arg6[%c0_16, %c0_17] : memref<16x128xf32, #tpu.memory_space<vmem>>, vector<16x128xf32>
      tpu.vector_store %arg6[%c0_16, %c0_17], %22 {strides = array<i32>} : memref<16x128xf32, #tpu.memory_space<vmem>>, vector<16x128xf32>,
    } else {
    }
    return
  }
  func.func @transform_0(%arg0: i32, %arg1: i32, %arg2: i32) -> (i32, i32) {
    %c0_i32 = arith.constant 0 : i32
    return %arg0, %arg2 : i32, i32
  }
  func.func @transform_1(%arg0: i32, %arg1: i32, %arg2: i32) -> (i32, i32) {
    %c0_i32 = arith.constant 0 : i32
    return %arg2, %arg1 : i32, i32
  }
  func.func @transform_2(%arg0: i32, %arg1: i32, %arg2: i32) -> (i32, i32) {
    %c0_i32 = arith.constant 0 : i32
    %c0_i32_0 = arith.constant 0 : i32
    return %c0_i32, %arg1 : i32, i32
  }
  func.func @transform_3(%arg0: i32, %arg1: i32, %arg2: i32) -> (i32, i32) {
    %c0_i32 = arith.constant 0 : i32
    return %arg0, %arg1 : i32, i32
  }
}

</mosaic_0001>

<llo_original>
// kernel: _geglu_pallas_impl.1
$region0: #{_geglu_pallas_impl.1}
  #allocation0 [shape = 'u32[]', space=smem, size = 0x4, offset = 0x4, fixed_abs, tag = 'smem constant byte address 0x4 - core index']
  #allocation1 [shape = 'u32[144,128]{1,0:T(1,128)}', space=vmem, size = 0x12000, scoped, tag = 'internal scratch']
  #allocation2 [shape = 'f32[16,256]{1,0:T(8,128)}', space=vmem, size = 0x4000, scoped, tag = 'scratch operand']
  %s0 = inlined_call_operand.vmem [shape: bf16[16,32], index: 0, kind: input, shape index: {}]
  %s1 = inlined_call_operand.hbm [shape: bf16[32,256], index: 1, kind: input, shape index: {}]
  %s2 = inlined_call_operand.vmem [shape: f32[1,256], index: 2, kind: input, shape index: {}]
  %s3 = inlined_call_operand.vmem [shape: f32[16,128], index: 3, kind: output, shape index: {}]
  %s4 = sld [smem:[#allocation0]]
  $region34: #{_geglu_pallas_impl.1} parent=0
    _
  %s6 = ssub.s32 1, %s4
  %s7 = scalar_select 0, %s6, %s4
  $region1: #{_geglu_pallas_impl.1} parent=0
    #allocation3 [shape = 'u8[16384]{0}', space=vmem, size = 0x4000, scoped, tag = 'input window, operand 1, single buffered']
    #allocation4 [shape = 's32[1]{0}', space=sflag, size = 0x4, scoped, tag = 'scoped memory for _geglu_pallas_impl.1']
    %8 = vsyncpa [#allocation4], 0
    // Predicated region
    $region2: #{_geglu_pallas_impl.1} parent=1 // pred_check
      _
    $region3: #{_geglu_pallas_impl.1} parent=1 // pred_check_branch
      %10 = sbr.rel (0) target = $region5
    $region4: #{_geglu_pallas_impl.1} parent=1 // pred_region
      _
    $region5: #{_geglu_pallas_impl.1} parent=1 // pred_fallthru
      _
    // Predicated region
    $region6: #{_geglu_pallas_impl.1} parent=1 // pred_check
      _
    $region7: #{_geglu_pallas_impl.1} parent=1 // pred_check_branch
      %12 = sbr.rel (0) target = $region9
    $region8: #{_geglu_pallas_impl.1} parent=1 // pred_region
      %s14 = ssub.s32 512, 512
      %15 = vsyncadd [#allocation4], %s14
      %s16 = sshll.u32 [#allocation3], 4
      %s17 = int_to_ptr.vmem [resolvable:$true] %s16
      %22 = dma.hbm_to_vmem [thread:$0]  %s1, 512, %s17, [#allocation4], 128, 128, 8
    $region9: #{_geglu_pallas_impl.1} parent=1 // pred_fallthru
      _
    // Predicated region
    $region10: #{_geglu_pallas_impl.1} parent=1 // pred_check
      _
    $region11: #{_geglu_pallas_impl.1} parent=1 // pred_check_branch
      %24 = sbr.rel (0) target = $region13
    $region12: #{_geglu_pallas_impl.1} parent=1 // pred_region
      _
    $region13: #{_geglu_pallas_impl.1} parent=1 // pred_fallthru
      _
    // Predicated region
    $region14: #{_geglu_pallas_impl.1} parent=1 // pred_check
      _
    $region15: #{_geglu_pallas_impl.1} parent=1 // pred_check_branch
      %26 = sbr.rel (0) target = $region17
    $region16: #{_geglu_pallas_impl.1} parent=1 // pred_region
      %27 = dma.done [#allocation4], 512
    $region17: #{_geglu_pallas_impl.1} parent=1 // pred_fallthru
      _
    %p29 = scmp.eq.s32.totalorder 0, 0
    // Predicated region
    $region18: #{_geglu_pallas_impl.1} parent=1 // pred_check
      %p30 = pneg %p29
    $region19: #{_geglu_pallas_impl.1} parent=1 // pred_check_branch
      %32 = sbr.rel (%p30) target = $region21
    $region20: #{_geglu_pallas_impl.1} parent=1 // pred_region
      %v33 = vld [vmem:[%s2] sm:$0x3]
      %v35 = vlaneseq
      %v36 = vshrl.u32 %v35, 7
      %v37 = vsub.s32 0, %v36
      %v38 = vrot.slane %v33, %v37
      %v39 = vlaneseq
      %v40 = vshrl.u32 %v39, 7
      %v41 = vsub.s32 1, %v40
      %v42 = vrot.slane %v33, %v41
      %45 = vst [vmem:[#allocation2] sm:$0xff] %v38
      %46 = vst [vmem:[#allocation2 + $0x8] sm:$0xff] %v42
      %47 = vst [vmem:[#allocation2 + $0x10] sm:$0xff] %v38
      %48 = vst [vmem:[#allocation2 + $0x18] sm:$0xff] %v42
    $region21: #{_geglu_pallas_impl.1} parent=1 // pred_fallthru
      _
    %v49 = vld [vmem:[#allocation2] sm:$0xff]
    %v50 = vld [vmem:[#allocation2 + $0x8] sm:$0xff]
    %v51 = vld [vmem:[#allocation2 + $0x10] sm:$0xff]
    %v52 = vld [vmem:[#allocation2 + $0x18] sm:$0xff]
    %v53 = vld [vmem:[%s0] sm:$0xf]
    %v54 = vld [vmem:[%s0 + $0x4] sm:$0xf]
    %v55 = vld [vmem:[#allocation3] sm:$0xff]
    %v56 = vld [vmem:[#allocation3 + $0x8] sm:$0xff]
    %v57 = vld [vmem:[#allocation3 + $0x10] sm:$0xff]
    %v58 = vld [vmem:[#allocation3 + $0x18] sm:$0xff]
    %v61 = vunpack.c.l.b16 %v53
    %v62 = vunpack.c.l.b16 %v54
    %v63 = vpack.c.b16 %v62, %v61
    %v68 = vunpack.c.l.b16 %v55
    %v69 = vunpack.c.h.b16 %v55
    %v70 = vunpack.c.l.b16 %v56
    %v71 = vunpack.c.h.b16 %v56
    %v72 = vunpack.c.l.b16 %v57
    %v73 = vunpack.c.h.b16 %v57
    %v74 = vunpack.c.l.b16 %v58
    %v75 = vunpack.c.h.b16 %v58
    %v76 = vpack.c.b16 %v70, %v68
    %v77 = vpack.c.b16 %v71, %v69
    %v78 = vpack.c.b16 %v74, %v72
    %v79 = vpack.c.b16 %v75, %v73
    %vm84 = vcmask 261120
    %v86 = vsel %vm84, %v63, 0
    %88 = vmatprep.subr.bf16.mxu0 %v77
    %89 = vmatpush1.bf16.msra.mxu0 %v76
    %90 = vmatprep.subr.bf16.mxu0 %v79
    %91 = vmatpush1.bf16.msra.mxu0 %v78
    %92 = vmatprep.subr.bf16.mxu0 0
    %93 = vmatpush1.bf16.msra.mxu0 0
    %94 = vmatprep.subr.bf16.mxu0 0
    %95 = vmatpush1.bf16.msra.mxu0 0
    %96 = vmatprep.subr.bf16.mxu0 0
    %97 = vmatpush1.bf16.msra.mxu0 0
    %98 = vmatprep.subr.bf16.mxu0 0
    %99 = vmatpush1.bf16.msra.mxu0 0
    %100 = vmatprep.subr.bf16.mxu0 0
    %101 = vmatpush1.bf16.msra.mxu0 0
    %102 = vmatprep.subr.bf16.mxu0 0
    %103 = vmatpush1.bf16.msra.mxu0 0
    %104 = vmatprep.subr.bf16.mxu0 0
    %105 = vmatpush1.bf16.msra.mxu0 0
    %106 = vmatprep.subr.bf16.mxu0 0
    %107 = vmatpush1.bf16.msra.mxu0 0
    %108 = vmatprep.subr.bf16.mxu0 0
    %109 = vmatpush1.bf16.msra.mxu0 0
    %110 = vmatprep.subr.bf16.mxu0 0
    %111 = vmatpush1.bf16.msra.mxu0 0
    %112 = vmatprep.subr.bf16.mxu0 0
    %113 = vmatpush1.bf16.msra.mxu0 0
    %114 = vmatprep.subr.bf16.mxu0 0
    %115 = vmatpush1.bf16.msra.mxu0 0
    %116 = vmatprep.subr.bf16.mxu0 0
    %117 = vmatpush1.bf16.msra.mxu0 0
    %118 = vmatprep.subr.bf16.mxu0 0
    %119 = vmatpush1.bf16.msra.mxu0 0
    %120 = vmatprep.mubr.bf16.mxu0 0
    %121 = vmatmul.mubr.bf16.gmra.mrb[0].mxu0 %v86
    %v122 = vpop.f32.mrb[0].mxu0
    %v123 = vadd.f32 0.0, %v122
    %v124 = vpop.f32.mrb[0].mxu0
    %v125 = vadd.f32 0.0, %v124
    %v126 = vpop.f32.mrb[0].mxu0
    %v127 = vadd.f32 0.0, %v126
    %v128 = vpop.f32.mrb[0].mxu0
    %v129 = vadd.f32 0.0, %v128
    %130 = vdwg.mxu0
    %v131 = vadd.f32 %v49, %v123
    %v132 = vadd.f32 %v50, %v125
    %v133 = vadd.f32 %v51, %v127
    %v134 = vadd.f32 %v52, %v129
    %135 = vst [vmem:[#allocation2] sm:$0xff] %v131
    %136 = vst [vmem:[#allocation2 + $0x8] sm:$0xff] %v132
    %137 = vst [vmem:[#allocation2 + $0x10] sm:$0xff] %v133
    %138 = vst [vmem:[#allocation2 + $0x18] sm:$0xff] %v134
    // Predicated region
    $region22: #{_geglu_pallas_impl.1} parent=1 // pred_check
      %p139 = pneg %p29
    $region23: #{_geglu_pallas_impl.1} parent=1 // pred_check_branch
      %141 = sbr.rel (%p139) target = $region25
    $region24: #{_geglu_pallas_impl.1} parent=1 // pred_region
      %v142 = vld [vmem:[#allocation2] sm:$0xff]
      %v143 = vld [vmem:[#allocation2 + $0x10] sm:$0xff]
      %v144 = vld [vmem:[#allocation2 + $0x8] sm:$0xff]
      %v145 = vld [vmem:[#allocation2 + $0x18] sm:$0xff]
      %v146 = vmul.f32 %v144, 0.5
      %v147 = vmul.f32 %v145, 0.5
      %v148 = vmul.f32 %v144, 0.70710677
      %v149 = vmul.f32 %v145, 0.70710677
      %v150 = verf.f32.pop %v148
      %v151 = verf.f32.pop %v149
      %v152 = vadd.f32 %v150, 1.0
      %v153 = vadd.f32 %v151, 1.0
      %v154 = vmul.f32 %v146, %v152
      %v155 = vmul.f32 %v147, %v153
      %v156 = vmul.f32 %v142, %v154
      %v157 = vmul.f32 %v143, %v155
      %158 = vst [vmem:[%s3] sm:$0xff] %v156
      %159 = vst [vmem:[%s3 + $0x8] sm:$0xff] %v157
    $region25: #{_geglu_pallas_impl.1} parent=1 // pred_fallthru
      _
    // Predicated region
    $region26: #{_geglu_pallas_impl.1} parent=1 // pred_check
      _
    $region27: #{_geglu_pallas_impl.1} parent=1 // pred_check_branch
      %161 = sbr.rel (0) target = $region29
    $region28: #{_geglu_pallas_impl.1} parent=1 // pred_region
      _
    $region29: #{_geglu_pallas_impl.1} parent=1 // pred_fallthru
      _
    // Predicated region
    $region30: #{_geglu_pallas_impl.1} parent=1 // pred_check
      _
    $region31: #{_geglu_pallas_impl.1} parent=1 // pred_check_branch
      %163 = sbr.rel (0) target = $region33
    $region32: #{_geglu_pallas_impl.1} parent=1 // pred_region
      _
    $region33: #{_geglu_pallas_impl.1} parent=1 // pred_fallthru
      _
    %164 = vsyncpa [#allocation4], 1

</llo_original>
